<compile_context>
chip_gen: v5e
topology: v5e:2x2
jax: 0.10.0
libtpu: 0.0.40
codegen_flags: <defaults>
</compile_context>

<pallas_src>
import jax
import jax.numpy as jnp
from jax import lax
from jax.experimental import pallas as pl
from jax.experimental.pallas import tpu as pltpu


def _onehot_gather_kernel(labels_ref, table_ref, out_ref):
    # labels_ref: (group, 1) int32 block of labels, in VMEM.
    # table_ref:  (V, H) full embedding table, resident in VMEM.
    # out_ref:    (group, H) output block for this grid step.
    group = labels_ref.shape[0]
    V = table_ref.shape[0]

    rows = labels_ref[...]                                  # (group, 1) int32
    rows = jnp.clip(rows, 0, V - 1)                         # no VMEM bounds-check in Pallas
    iota_v = lax.broadcasted_iota(jnp.int32, (group, V), 1)  # (group, V)
    one_hot = (rows == iota_v).astype(table_ref.dtype)       # (group, V)

    # MXU gather: (group, V) @ (V, H) -> (group, H); one dense unmasked store.
    out_ref[...] = jnp.dot(
        one_hot, table_ref[...], preferred_element_type=jnp.float32
    ).astype(out_ref.dtype)


def embedding_lookup_pallas(labels, table, *, max_group=256):
    """Gather table[labels] with a Pallas kernel. labels: (B,) integer."""
    B = labels.shape[0]
    V, H = table.shape

    # Small batches: single grid step. Large batches: 256-row output blocks.
    if B <= max_group:
        group = max(8, ((B + 7) // 8) * 8)   # sublane-aligned single block
    else:
        group = max_group
    B_pad = ((B + group - 1) // group) * group

    labels_i32 = labels.astype(jnp.int32)
    if B_pad != B:
        # Pad with label 0 (always a valid row); padded rows are sliced off below.
        labels_i32 = jnp.pad(labels_i32, (0, B_pad - B))
    labels_2d = labels_i32.reshape(B_pad, 1)

    itemsize = jnp.dtype(table.dtype).itemsize
    table_bytes = V * H * itemsize
    # Table (double-buffered by the default pipeline, though only DMA'd once)
    # + output double-buffer + labels + one-hot intermediates + headroom.
    vmem_limit = int(
        2 * table_bytes
        + 4 * group * H * itemsize
        + 4 * group * V * 4
        + 4 * group * 4
        + (4 << 20)
    )
    vmem_limit = min(vmem_limit, 128 * 1024 * 1024)

    cost = pl.CostEstimate(
        flops=2 * B_pad * V * H,                      # one-hot matmul gather
        transcendentals=0,
        bytes_accessed=table_bytes + B_pad * H * itemsize + B_pad * 4,
    )

    out = pl.pallas_call(
        _onehot_gather_kernel,
        out_shape=jax.ShapeDtypeStruct((B_pad, H), table.dtype),
        grid_spec=pltpu.PrefetchScalarGridSpec(
            num_scalar_prefetch=0,
            grid=(B_pad // group,),
            in_specs=[
                # Per-step block of labels.
                pl.BlockSpec((group, 1), lambda i: (i, 0)),
                # Whole table, constant block index -> DMA'd once, stays resident.
                pl.BlockSpec((V, H), lambda i: (0, 0)),
            ],
            out_specs=pl.BlockSpec((group, H), lambda i: (i, 0)),
        ),
        compiler_params=pltpu.CompilerParams(
            dimension_semantics=("parallel",),
            vmem_limit_bytes=vmem_limit,
        ),
        cost_estimate=cost,
    )(labels_2d, table)

    return out[:B] if B_pad != B else out


class LabelEmbedder:
    """JAX/Pallas port of the PyTorch LabelEmbedder."""

    def __init__(self, num_classes, hidden_size, dropout_prob, *, param_key):
        use_cfg_embedding = int(dropout_prob > 0)
        # nn.Embedding default init: N(0, 1). Deterministic synthetic weights.
        self.embedding_table = jax.random.normal(
            param_key, (num_classes + use_cfg_embedding, hidden_size),
            dtype=jnp.float32)
        self.num_classes = num_classes
        self.dropout_prob = dropout_prob

    def token_drop(self, labels, rng_key=None, force_drop_ids=None):
        if force_drop_ids is None:
            drop_ids = (
                jax.random.uniform(rng_key, (labels.shape[0],))
                < self.dropout_prob
            )
        else:
            drop_ids = force_drop_ids == 1
        labels = jnp.where(drop_ids, self.num_classes, labels)
        return labels

    def __call__(self, labels, train, rng_key=None, force_drop_ids=None):
        use_dropout = self.dropout_prob > 0
        if (train and use_dropout) or (force_drop_ids is not None):
            labels = self.token_drop(labels, rng_key, force_drop_ids)
        embeddings = embedding_lookup_pallas(labels, self.embedding_table)
        # unsqueeze(1): (B, H) -> (B, 1, H)
        return embeddings[:, None, :]


def _reference(labels, embedder, train, rng_key=None, force_drop_ids=None):
    """Pure-JAX reference for correctness check."""
    use_dropout = embedder.dropout_prob > 0
    if (train and use_dropout) or (force_drop_ids is not None):
        labels = embedder.token_drop(labels, rng_key, force_drop_ids)
    return jnp.take(embedder.embedding_table, labels, axis=0)[:, None, :]


if __name__ == "__main__":
    num_classes = 10
    hidden_size = 128
    dropout_prob = 0.1
    batch = 8

    root = jax.random.PRNGKey(0)
    k_param, k_labels, k_drop = jax.random.split(root, 3)

    embedder = LabelEmbedder(num_classes, hidden_size, dropout_prob,
                             param_key=k_param)
    labels = jax.random.randint(k_labels, (batch,), 0, num_classes,
                                dtype=jnp.int32)

    # Eval path (no dropout): deterministic, exact gather.
    out_eval = embedder(labels, train=False)
    out_eval = jax.block_until_ready(out_eval)
    ref_eval = _reference(labels, embedder, train=False)
    assert out_eval.shape == (batch, 1, hidden_size)
    assert jnp.array_equal(out_eval, ref_eval), "eval-path mismatch"

    # Train path with CFG label dropout (same RNG key fed to both).
    out_train = embedder(labels, train=True, rng_key=k_drop)
    out_train = jax.block_until_ready(out_train)
    ref_train = _reference(labels, embedder, train=True, rng_key=k_drop)
    assert jnp.array_equal(out_train, ref_train), "train-path mismatch"

    # force_drop_ids path.
    force_ids = jnp.array([1, 0, 1, 0, 0, 0, 1, 0], dtype=jnp.int32)
    out_forced = embedder(labels, train=False, force_drop_ids=force_ids)
    out_forced = jax.block_until_ready(out_forced)
    ref_forced = _reference(labels, embedder, train=False,
                            force_drop_ids=force_ids)
    assert jnp.array_equal(out_forced, ref_forced), "forced-drop-path mismatch"

    # Ragged batch (exercises the pad/slice path).
    labels5 = labels[:5]
    out5 = jax.block_until_ready(embedder(labels5, train=False))
    ref5 = _reference(labels5, embedder, train=False)
    assert out5.shape == (5, 1, hidden_size)
    assert jnp.array_equal(out5, ref5), "ragged-batch mismatch"

    print("KERNEL_OK")
</pallas_src>

<mosaic_0001>
module attributes {stable_mosaic.version = 11 : i64} {
  func.func @_onehot_gather_kernel(%arg0: i32, %arg1: memref<8x1xi32, #tpu.memory_space<vmem>>, %arg2: memref<11x128xf32, #tpu.memory_space<vmem>>, %arg3: memref<8x128xf32, #tpu.memory_space<vmem>>) attributes {dimension_semantics = [#tpu.dimension_semantics<parallel>], iteration_bounds = array<i64: 1>, scalar_prefetch = 0 : i64, scratch_operands = 0 : i64, tpu.core_type = #tpu.core_type<tc>, window_params = [{transform_indices = @transform_0, window_bounds = array<i64: 8, 1>}, {pipeline_mode = #tpu.pipeline_mode<synchronous>, transform_indices = @transform_1, window_bounds = array<i64: 11, 128>}, {transform_indices = @transform_2, window_bounds = array<i64: 8, 128>}]} {
    %c0 = arith.constant 0 : index
    %c0_0 = arith.constant 0 : index
    %0 = vector.load %arg1[%c0, %c0_0] : memref<8x1xi32, #tpu.memory_space<vmem>>, vector<8x1xi32>
    %c0_i32 = arith.constant 0 : i32
    %c10_i32 = arith.constant 10 : i32
    %1 = vector.broadcast %c0_i32 : i32 to vector<8x1xi32>
    %2 = arith.maxsi %1, %0 : vector<8x1xi32>
    %3 = vector.broadcast %c10_i32 : i32 to vector<8x1xi32>
    %4 = arith.minsi %3, %2 : vector<8x1xi32>
    %5 = tpu.iota {dimensions = array<i32: 1>} : vector<8x11xi32>
    %6 = vector.broadcast %4 : vector<8x1xi32> to vector<8x11xi32>
    %7 = arith.cmpi eq, %6, %5 : vector<8x11xi32>
    %8 = arith.extui %7 : vector<8x11xi1> to vector<8x11xi32>
    %9 = arith.sitofp %8 : vector<8x11xi32> to vector<8x11xf32>
    %c0_1 = arith.constant 0 : index
    %c0_2 = arith.constant 0 : index
    %10 = vector.load %arg2[%c0_1, %c0_2] : memref<11x128xf32, #tpu.memory_space<vmem>>, vector<11x128xf32>
    %cst = arith.constant dense<0.000000e+00> : vector<8x128xf32>
    %11 = tpu.matmul %9, %10, %cst {dimension_numbers = #tpu.dot_dimension_numbers<[1], [0], [0], [1], [0, 0, 1, 1], [], []>} : vector<8x11xf32>, vector<11x128xf32>, vector<8x128xf32> -> vector<8x128xf32>
    %c0_3 = arith.constant 0 : index
    %c0_4 = arith.constant 0 : index
    %12 = vector.load %arg3[%c0_3, %c0_4] : memref<8x128xf32, #tpu.memory_space<vmem>>, vector<8x128xf32>
    tpu.vector_store %arg3[%c0_3, %c0_4], %11 {strides = array<i32>} : memref<8x128xf32, #tpu.memory_space<vmem>>, vector<8x128xf32>,
    return
  }
  func.func @transform_0(%arg0: i32) -> (i32, i32) {
    %c0_i32 = arith.constant 0 : i32
    %c0_i32_0 = arith.constant 0 : i32
    return %arg0, %c0_i32 : i32, i32
  }
  func.func @transform_1(%arg0: i32) -> (i32, i32) {
    %c0_i32 = arith.constant 0 : i32
    %c0_i32_0 = arith.constant 0 : i32
    %c0_i32_1 = arith.constant 0 : i32
    return %c0_i32, %c0_i32_0 : i32, i32
  }
  func.func @transform_2(%arg0: i32) -> (i32, i32) {
    %c0_i32 = arith.constant 0 : i32
    %c0_i32_0 = arith.constant 0 : i32
    return %arg0, %c0_i32 : i32, i32
  }
}

</mosaic_0001>

<llo_original>
// kernel: tpu_custom_call.1
$region0: #{tpu_custom_call.1}
  #allocation0 [shape = 'u32[]', space=smem, size = 0x4, offset = 0x4, fixed_abs, tag = 'smem constant byte address 0x4 - core index']
  #allocation1 [shape = 'u32[72,128]{1,0:T(1,128)}', space=vmem, size = 0x9000, scoped, tag = 'internal scratch']
  %s0 = inlined_call_operand.vmem [shape: s32[8,1], index: 0, kind: input, shape index: {}]
  %s1 = inlined_call_operand.hbm [shape: f32[11,128], index: 1, kind: input, shape index: {}]
  %s2 = inlined_call_operand.hbm [shape: f32[8,128], index: 2, kind: output, shape index: {}]
  %s3 = sld [smem:[#allocation0]]
  $region22: #{tpu_custom_call.1} parent=0
    _
  %s5 = ssub.s32 1, %s3
  %s6 = scalar_select 0, %s5, %s3
  $region1: #{tpu_custom_call.1} parent=0
    #allocation2 [shape = 'u8[8192]{0}', space=vmem, size = 0x2000, scoped, tag = 'input window, operand 1, single buffered']
    #allocation3 [shape = 's32[1]{0}', space=sflag, size = 0x4, scoped, tag = 'scoped memory for tpu_custom_call.1']
    #allocation4 [shape = 's32[1]{0}', space=sflag, size = 0x4, scoped, tag = 'scoped memory for tpu_custom_call.1']
    #allocation5 [shape = 'u8[4096]{0}', space=vmem, size = 0x1000, scoped, tag = 'output window, operand 0, single buffered']
    %7 = vsyncpa [#allocation3], 0
    %8 = vsyncpa [#allocation4], 0
    // Predicated region
    $region2: #{tpu_custom_call.1} parent=1 // pred_check
      _
    $region3: #{tpu_custom_call.1} parent=1 // pred_check_branch
      %10 = sbr.rel (0) target = $region5
    $region4: #{tpu_custom_call.1} parent=1 // pred_region
      _
    $region5: #{tpu_custom_call.1} parent=1 // pred_fallthru
      _
    // Predicated region
    $region6: #{tpu_custom_call.1} parent=1 // pred_check
      _
    $region7: #{tpu_custom_call.1} parent=1 // pred_check_branch
      %12 = sbr.rel (0) target = $region9
    $region8: #{tpu_custom_call.1} parent=1 // pred_region
      %14 = vsyncadd [#allocation3], 0
      %s15 = sshll.u32 %s1, 4
      %s16 = int_to_ptr.hbm [resolvable:$true] %s15
      %s17 = sshll.u32 [#allocation2], 4
      %s18 = int_to_ptr.vmem [resolvable:$true] %s17
      %23 = dma.hbm_to_vmem [thread:$0]  %s16, 256, %s18, [#allocation3], 128, 128, 8
    $region9: #{tpu_custom_call.1} parent=1 // pred_fallthru
      _
    // Predicated region
    $region10: #{tpu_custom_call.1} parent=1 // pred_check
      _
    $region11: #{tpu_custom_call.1} parent=1 // pred_check_branch
      %25 = sbr.rel (0) target = $region13
    $region12: #{tpu_custom_call.1} parent=1 // pred_region
      %27 = dma.done [#allocation3], 256
    $region13: #{tpu_custom_call.1} parent=1 // pred_fallthru
      _
    %v28 = vld [vmem:[%s0] sm:$0xff]
    %vm29 = vcmp.gt.s32.totalorder %v28, 0
    %v30 = vsel %vm29, %v28, 0
    %vm31 = vcmp.lt.s32.totalorder %v30, 10
    %v32 = vsel %vm31, %v30, 10
    %v33 = vlaneseq
    %v34 = vand.u32 %v33, 127
    %35 = vset.pattern.permute.xlu0 0
    %36 = vperm.xlu0 %35, %v32
    %v37 = vpop.permute.xlu0 %36
    %vm38 = vcmp.eq.s32.totalorder %v37, %v34
    %v39 = vsel %vm38, 1, 0
    %v40 = vcvt.s32.f32 %v39
    %v41 = vld [vmem:[#allocation2] sm:$0xff]
    %v42 = vld [vmem:[#allocation2 + $0x8] sm:$0x7]
    %vm43 = vcmask 89088
    %v45 = vsel %vm43, %v40, 0
    %vm47 = vcmask 1042432
    %v49 = vsel %vm47, %v42, 0
    %51 = vmatpush.msra.mxu0 0.0
    %52 = vmatpush.msra.mxu0 0.0
    %53 = vmatpush.msra.mxu0 0.0
    %54 = vmatpush.msra.mxu0 0.0
    %55 = vmatpush.msra.mxu0 0.0
    %56 = vmatpush.msra.mxu0 0.0
    %57 = vmatpush.msra.mxu0 0.0
    %58 = vmatpush.msra.mxu0 0.0
    %59 = vmatpush.msra.mxu0 0.0
    %60 = vmatpush.msra.mxu0 0.0
    %61 = vmatpush.msra.mxu0 0.0
    %62 = vmatpush.msra.mxu0 0.0
    %63 = vmatpush.msra.mxu0 0.0
    %64 = vmatpush.msra.mxu0 0.0
    %65 = vmatpush.msra.mxu0 %v49
    %66 = vmatpush.msra.mxu0 %v41
    %67 = vmatmul.f32.gmra.mxu0 %v45
    %v68 = vpop.f32.mrf.mxu0
    %v69 = vadd.f32 0.0, %v68
    %70 = vdwg.mxu0
    %71 = vst [vmem:[#allocation5] sm:$0xff] %v69
    // Predicated region
    $region14: #{tpu_custom_call.1} parent=1 // pred_check
      _
    $region15: #{tpu_custom_call.1} parent=1 // pred_check_branch
      %73 = sbr.rel (0) target = $region17
    $region16: #{tpu_custom_call.1} parent=1 // pred_region
      %75 = vsyncadd [#allocation4], 0
      %s77 = sshll.u32 [#allocation5], 4
      %s78 = int_to_ptr.vmem [resolvable:$true] %s77
      %s79 = sshll.u32 %s2, 4
      %s80 = int_to_ptr.hbm [resolvable:$true] %s79
      %82 = dma.vmem_to_hbm [thread:$0]  %s78, 128, %s80, [#allocation4]
    $region17: #{tpu_custom_call.1} parent=1 // pred_fallthru
      _
    // Predicated region
    $region18: #{tpu_custom_call.1} parent=1 // pred_check
      _
    $region19: #{tpu_custom_call.1} parent=1 // pred_check_branch
      %84 = sbr.rel (0) target = $region21
    $region20: #{tpu_custom_call.1} parent=1 // pred_region
      %86 = dma.done [#allocation4], 128
    $region21: #{tpu_custom_call.1} parent=1 // pred_fallthru
      _
    %87 = vsyncpa [#allocation3], 1
    %88 = vsyncpa [#allocation4], 1

</llo_original>
